<compile_context>
chip_gen: v5e
topology: v5e:2x2
jax: 0.10.0
libtpu: 0.0.40
codegen_flags: <defaults>
</compile_context>

<pallas_src>
import functools

import jax
import jax.numpy as jnp
from jax.experimental import pallas as pl
from jax.experimental.pallas import tpu as pltpu


def _round_up(x, m):
    return (x + m - 1) // m * m


def _mlp_kernel(x_ref, w1_ref, b1_ref, w2_ref, b2_ref, o_ref, h_ref, *,
                activation):
    # Grid: (batch_tiles, vocab_tiles); vocab tiles innermost ("arbitrary").
    # x_ref : (TM, in_dim)  bf16          w1_ref: (in_dim, hidden) bf16
    # b1_ref: (1, hidden)   f32           w2_ref: (hidden, TN)     bf16
    # b2_ref: (1, TN)       f32           o_ref : (TM, TN)         f32
    # h_ref : (TM, hidden)  bf16 VMEM scratch (persists across vocab tiles)

    @pl.when(pl.program_id(1) == 0)
    def _compute_hidden():
        h = jnp.dot(x_ref[...], w1_ref[...],
                    preferred_element_type=jnp.float32)
        h = h + b1_ref[...]
        if activation == "relu":
            h = jnp.maximum(h, 0.0)
        else:  # tanh
            h = jnp.tanh(h)
        h_ref[...] = h.astype(h_ref.dtype)

    out = jnp.dot(h_ref[...], w2_ref[...],
                  preferred_element_type=jnp.float32)
    out = out + b2_ref[...]
    o_ref[...] = out.astype(o_ref.dtype)


def next_word_predictor_forward(x_ids, params, *, activation="relu",
                                tile_m=128, tile_n=512):
    """x_ids: (B, block_size) int32 token ids. Returns (B, vocab) f32 logits."""
    emb_w, w1, b1, w2, b2 = (
        params["emb"], params["w1"], params["b1"], params["w2"], params["b2"]
    )
    B, block_size = x_ids.shape
    vocab_size, emb_dim = emb_w.shape
    in_dim = block_size * emb_dim
    hidden = w1.shape[1]

    # --- embedding gather + flatten (glue), cast to bf16 for the MXU -------
    x_flat = jnp.take(emb_w, x_ids, axis=0).reshape(B, in_dim).astype(jnp.bfloat16)
    w1c = w1.astype(jnp.bfloat16)
    w2c = w2.astype(jnp.bfloat16)
    b1c = b1.astype(jnp.float32)
    b2c = b2.astype(jnp.float32)

    # --- tile sizes / padding ----------------------------------------------
    tm = min(tile_m, _round_up(B, 8))            # batch tile (sublane multiple)
    bp = _round_up(B, tm)
    tn = min(tile_n, _round_up(vocab_size, 128))  # lane-dense vocab tile
    vp = _round_up(vocab_size, tn)

    if bp != B:
        x_flat = jnp.pad(x_flat, ((0, bp - B), (0, 0)))
    if vp != vocab_size:
        w2c = jnp.pad(w2c, ((0, 0), (0, vp - vocab_size)))
        b2c = jnp.pad(b2c, ((0, 0), (0, vp - vocab_size)))

    grid = (bp // tm, vp // tn)

    # --- VMEM budget (double-buffered inputs/outputs + scratch) -------------
    vmem_need = (
        2 * tm * in_dim * 2          # x tile, bf16
        + 2 * in_dim * hidden * 2    # w1, bf16
        + 2 * hidden * 4             # b1, f32
        + 2 * hidden * tn * 2        # w2 tile, bf16
        + 2 * tn * 4                 # b2 tile, f32
        + 2 * tm * tn * 4            # out tile, f32
        + tm * hidden * 2            # h scratch, bf16
    )
    vmem_limit = int(min(48 * 1024 * 1024,
                         max(32 * 1024 * 1024, 2 * vmem_need)))

    cost = pl.CostEstimate(
        flops=2 * bp * (in_dim * hidden + hidden * vp),
        transcendentals=(bp * hidden if activation == "tanh" else 0),
        bytes_accessed=(bp * in_dim * 2 + in_dim * hidden * 2 + hidden * 4
                        + grid[0] * (hidden * vp * 2 + vp * 4)
                        + bp * vp * 4),
    )

    kernel = functools.partial(_mlp_kernel, activation=activation)

    out = pl.pallas_call(
        kernel,
        out_shape=jax.ShapeDtypeStruct((bp, vp), jnp.float32),
        grid_spec=pltpu.PrefetchScalarGridSpec(
            num_scalar_prefetch=0,
            grid=grid,
            in_specs=[
                pl.BlockSpec((tm, in_dim), lambda i, j: (i, 0)),      # x
                pl.BlockSpec((in_dim, hidden), lambda i, j: (0, 0)),  # w1
                pl.BlockSpec((1, hidden), lambda i, j: (0, 0)),       # b1
                pl.BlockSpec((hidden, tn), lambda i, j: (0, j)),      # w2
                pl.BlockSpec((1, tn), lambda i, j: (0, j)),           # b2
            ],
            out_specs=pl.BlockSpec((tm, tn), lambda i, j: (i, j)),
            scratch_shapes=[pltpu.VMEM((tm, hidden), jnp.bfloat16)],
        ),
        compiler_params=pltpu.CompilerParams(
            dimension_semantics=("parallel", "arbitrary"),
            vmem_limit_bytes=vmem_limit,
        ),
        cost_estimate=cost,
    )(x_flat, w1c, b1c, w2c, b2c)

    return out[:B, :vocab_size]


def init_params(key, *, vocab_size, emb_dim, block_size, hidden_size):
    """Deterministic parameter init (shapes match the PyTorch module)."""
    k_emb, k_w1, k_b1, k_w2, k_b2 = jax.random.split(key, 5)
    in_dim = block_size * emb_dim
    emb = jax.random.normal(k_emb, (vocab_size, emb_dim), jnp.float32)
    lim1 = 1.0 / jnp.sqrt(in_dim)
    w1 = jax.random.uniform(k_w1, (in_dim, hidden_size), jnp.float32, -lim1, lim1)
    b1 = jax.random.uniform(k_b1, (1, hidden_size), jnp.float32, -lim1, lim1)
    lim2 = 1.0 / jnp.sqrt(hidden_size)
    w2 = jax.random.uniform(k_w2, (hidden_size, vocab_size), jnp.float32, -lim2, lim2)
    b2 = jax.random.uniform(k_b2, (1, vocab_size), jnp.float32, -lim2, lim2)
    return {"emb": emb, "w1": w1, "b1": b1, "w2": w2, "b2": b2}


def _reference_forward(x_ids, params, activation="relu"):
    """Pure-JAX reference with the same bf16-operand / f32-accumulate recipe."""
    B = x_ids.shape[0]
    xf = jnp.take(params["emb"], x_ids, axis=0).reshape(B, -1).astype(jnp.bfloat16)
    h = jnp.dot(xf, params["w1"].astype(jnp.bfloat16),
                preferred_element_type=jnp.float32) + params["b1"]
    h = jnp.maximum(h, 0.0) if activation == "relu" else jnp.tanh(h)
    h = h.astype(jnp.bfloat16)
    out = jnp.dot(h, params["w2"].astype(jnp.bfloat16),
                  preferred_element_type=jnp.float32) + params["b2"]
    return out


if __name__ == "__main__":
    # Small shapes consistent with the module (streamlit defaults scaled down).
    BATCH = 8
    BLOCK_SIZE = 4
    EMB_DIM = 32        # -> flattened input dim 128
    HIDDEN = 128
    VOCAB = 300         # ragged vocab -> exercises lane padding
    ACTIVATION = "relu"

    key = jax.random.PRNGKey(0)
    k_params, k_ids = jax.random.split(key)
    params = init_params(
        k_params, vocab_size=VOCAB, emb_dim=EMB_DIM,
        block_size=BLOCK_SIZE, hidden_size=HIDDEN)
    x_ids = jax.random.randint(k_ids, (BATCH, BLOCK_SIZE), 0, VOCAB, jnp.int32)

    # tile_n=128 so the demo exercises the multi-vocab-tile path (grid=(1,3)).
    out = next_word_predictor_forward(
        x_ids, params, activation=ACTIVATION, tile_n=128)
    out = jax.block_until_ready(out)

    ref = _reference_forward(x_ids, params, ACTIVATION)
    assert out.shape == (BATCH, VOCAB)
    assert jnp.allclose(out, ref, atol=1e-2, rtol=1e-2), "mismatch vs reference"

    print("KERNEL_OK")
</pallas_src>

<mosaic_0001>
module attributes {stable_mosaic.version = 11 : i64} {
  func.func @_mlp_kernel(%arg0: i32, %arg1: i32, %arg2: memref<8x128xbf16, #tpu.memory_space<vmem>>, %arg3: memref<128x128xbf16, #tpu.memory_space<vmem>>, %arg4: memref<1x128xf32, #tpu.memory_space<vmem>>, %arg5: memref<128x128xbf16, #tpu.memory_space<vmem>>, %arg6: memref<1x128xf32, #tpu.memory_space<vmem>>, %arg7: memref<8x128xf32, #tpu.memory_space<vmem>>, %arg8: memref<8x128xbf16, #tpu.memory_space<vmem>>) attributes {dimension_semantics = [#tpu.dimension_semantics<parallel>, #tpu.dimension_semantics<arbitrary>], iteration_bounds = array<i64: 1, 3>, scalar_prefetch = 0 : i64, scratch_operands = 1 : i64, tpu.core_type = #tpu.core_type<tc>, window_params = [{transform_indices = @transform_0, window_bounds = array<i64: 8, 128>}, {pipeline_mode = #tpu.pipeline_mode<synchronous>, transform_indices = @transform_1, window_bounds = array<i64: 128, 128>}, {pipeline_mode = #tpu.pipeline_mode<synchronous>, transform_indices = @transform_2, window_bounds = array<i64: 1, 128>}, {transform_indices = @transform_3, window_bounds = array<i64: 128, 128>}, {transform_indices = @transform_4, window_bounds = array<i64: 1, 128>}, {transform_indices = @transform_5, window_bounds = array<i64: 8, 128>}]} {
    %c0_i32 = arith.constant 0 : i32
    %0 = arith.cmpi eq, %arg1, %c0_i32 : i32
    %1 = arith.extui %0 : i1 to i32
    %c0_i32_0 = arith.constant 0 : i32
    %2 = arith.cmpi ne, %1, %c0_i32_0 : i32
    scf.if %2 {
      %c0_8 = arith.constant 0 : index
      %c0_9 = arith.constant 0 : index
      %10 = vector.load %arg2[%c0_8, %c0_9] : memref<8x128xbf16, #tpu.memory_space<vmem>>, vector<8x128xbf16>
      %c0_10 = arith.constant 0 : index
      %c0_11 = arith.constant 0 : index
      %11 = vector.load %arg3[%c0_10, %c0_11] : memref<128x128xbf16, #tpu.memory_space<vmem>>, vector<128x128xbf16>
      %cst_12 = arith.constant dense<0.000000e+00> : vector<8x128xf32>
      %12 = tpu.matmul %10, %11, %cst_12 {dimension_numbers = #tpu.dot_dimension_numbers<[1], [0], [0], [1], [0, 0, 1, 1], [], []>} : vector<8x128xbf16>, vector<128x128xbf16>, vector<8x128xf32> -> vector<8x128xf32>
      %c0_13 = arith.constant 0 : index
      %c0_14 = arith.constant 0 : index
      %13 = vector.load %arg4[%c0_13, %c0_14] : memref<1x128xf32, #tpu.memory_space<vmem>>, vector<1x128xf32>
      %14 = vector.broadcast %13 : vector<1x128xf32> to vector<8x128xf32>
      %15 = arith.addf %12, %14 : vector<8x128xf32>
      %cst_15 = arith.constant 0.000000e+00 : f32
      %16 = vector.broadcast %cst_15 : f32 to vector<8x128xf32>
      %17 = arith.maximumf %15, %16 : vector<8x128xf32>
      %18 = arith.truncf %17 : vector<8x128xf32> to vector<8x128xbf16>
      %c0_16 = arith.constant 0 : index
      %c0_17 = arith.constant 0 : index
      %19 = vector.load %arg8[%c0_16, %c0_17] : memref<8x128xbf16, #tpu.memory_space<vmem>>, vector<8x128xbf16>
      tpu.vector_store %arg8[%c0_16, %c0_17], %18 {strides = array<i32>} : memref<8x128xbf16, #tpu.memory_space<vmem>>, vector<8x128xbf16>,
    } else {
    }
    %c0 = arith.constant 0 : index
    %c0_1 = arith.constant 0 : index
    %3 = vector.load %arg8[%c0, %c0_1] : memref<8x128xbf16, #tpu.memory_space<vmem>>, vector<8x128xbf16>
    %c0_2 = arith.constant 0 : index
    %c0_3 = arith.constant 0 : index
    %4 = vector.load %arg5[%c0_2, %c0_3] : memref<128x128xbf16, #tpu.memory_space<vmem>>, vector<128x128xbf16>
    %cst = arith.constant dense<0.000000e+00> : vector<8x128xf32>
    %5 = tpu.matmul %3, %4, %cst {dimension_numbers = #tpu.dot_dimension_numbers<[1], [0], [0], [1], [0, 0, 1, 1], [], []>} : vector<8x128xbf16>, vector<128x128xbf16>, vector<8x128xf32> -> vector<8x128xf32>
    %c0_4 = arith.constant 0 : index
    %c0_5 = arith.constant 0 : index
    %6 = vector.load %arg6[%c0_4, %c0_5] : memref<1x128xf32, #tpu.memory_space<vmem>>, vector<1x128xf32>
    %7 = vector.broadcast %6 : vector<1x128xf32> to vector<8x128xf32>
    %8 = arith.addf %5, %7 : vector<8x128xf32>
    %c0_6 = arith.constant 0 : index
    %c0_7 = arith.constant 0 : index
    %9 = vector.load %arg7[%c0_6, %c0_7] : memref<8x128xf32, #tpu.memory_space<vmem>>, vector<8x128xf32>
    tpu.vector_store %arg7[%c0_6, %c0_7], %8 {strides = array<i32>} : memref<8x128xf32, #tpu.memory_space<vmem>>, vector<8x128xf32>,
    return
  }
  func.func @transform_0(%arg0: i32, %arg1: i32) -> (i32, i32) {
    %c0_i32 = arith.constant 0 : i32
    %c0_i32_0 = arith.constant 0 : i32
    return %arg0, %c0_i32 : i32, i32
  }
  func.func @transform_1(%arg0: i32, %arg1: i32) -> (i32, i32) {
    %c0_i32 = arith.constant 0 : i32
    %c0_i32_0 = arith.constant 0 : i32
    %c0_i32_1 = arith.constant 0 : i32
    return %c0_i32, %c0_i32_0 : i32, i32
  }
  func.func @transform_2(%arg0: i32, %arg1: i32) -> (i32, i32) {
    %c0_i32 = arith.constant 0 : i32
    %c0_i32_0 = arith.constant 0 : i32
    %c0_i32_1 = arith.constant 0 : i32
    return %c0_i32, %c0_i32_0 : i32, i32
  }
  func.func @transform_3(%arg0: i32, %arg1: i32) -> (i32, i32) {
    %c0_i32 = arith.constant 0 : i32
    %c0_i32_0 = arith.constant 0 : i32
    return %c0_i32, %arg1 : i32, i32
  }
  func.func @transform_4(%arg0: i32, %arg1: i32) -> (i32, i32) {
    %c0_i32 = arith.constant 0 : i32
    %c0_i32_0 = arith.constant 0 : i32
    return %c0_i32, %arg1 : i32, i32
  }
  func.func @transform_5(%arg0: i32, %arg1: i32) -> (i32, i32) {
    %c0_i32 = arith.constant 0 : i32
    return %arg0, %arg1 : i32, i32
  }
}

</mosaic_0001>

<llo_original>
// kernel: tpu_custom_call.1
$region0: #{tpu_custom_call.1}
  #allocation0 [shape = 'u32[]', space=smem, size = 0x4, offset = 0x4, fixed_abs, tag = 'smem constant byte address 0x4 - core index']
  #allocation1 [shape = 'u32[72,128]{1,0:T(1,128)}', space=vmem, size = 0x9000, scoped, tag = 'internal scratch']
  #allocation2 [shape = 'bf16[8,128]{1,0:T(8,128)(2,1)}', space=vmem, size = 0x800, scoped, tag = 'scratch operand']
  %s0 = inlined_call_operand.hbm [shape: bf16[8,128], index: 0, kind: input, shape index: {}]
  %s1 = inlined_call_operand.hbm [shape: bf16[128,128], index: 1, kind: input, shape index: {}]
  %s2 = inlined_call_operand.hbm [shape: f32[1,128], index: 2, kind: input, shape index: {}]
  %s3 = inlined_call_operand.hbm [shape: bf16[128,384], index: 3, kind: input, shape index: {}]
  %s4 = inlined_call_operand.vmem [shape: f32[1,384], index: 4, kind: input, shape index: {}]
  %s5 = inlined_call_operand.hbm [shape: f32[8,384], index: 5, kind: output, shape index: {}]
  %s6 = sld [smem:[#allocation0]]
  $region73: #{tpu_custom_call.1} parent=0
    _
  %s8 = ssub.s32 1, %s6
  %s9 = scalar_select 0, %s8, %s6
  $region1: #{tpu_custom_call.1} parent=0
    #allocation3 [shape = 'u8[2048]{0}', space=vmem, size = 0x800, scoped, tag = 'input window, operand 0, single buffered']
    #allocation4 [shape = 's32[2]{0}', space=sflag, size = 0x8, scoped, tag = 'scoped memory for tpu_custom_call.1']
    #allocation5 [shape = 's32[2]{0}', space=sflag, size = 0x8, scoped, tag = 'scoped memory for tpu_custom_call.1']
    #allocation6 [shape = 'u8[32768]{0}', space=vmem, size = 0x8000, scoped, tag = 'input window, operand 1, single buffered']
    #allocation7 [shape = 's32[1]{0}', space=sflag, size = 0x4, scoped, tag = 'scoped memory for tpu_custom_call.1']
    #allocation8 [shape = 'u8[512]{0}', space=vmem, size = 0x400, scoped, tag = 'input window, operand 2, single buffered']
    #allocation9 [shape = 'u8[65536]{0}', space=vmem, size = 0x10000, scoped, tag = 'input window, operand 3']
    #allocation10 [shape = 's32[2]{0}', space=sflag, size = 0x8, scoped, tag = 'scoped memory for tpu_custom_call.1']
    #allocation11 [shape = 'u8[8192]{0}', space=vmem, size = 0x2000, scoped, tag = 'output window, operand 0']
    %10 = vsyncpa [#allocation4], 0
    %11 = vsyncpa [#allocation7], 0
    %12 = vsyncpa [#allocation10], 0
    %s13 = scalar_lea.sflag [#allocation10], 1
    %14 = vsyncpa %s13, 0
    %15 = vsyncpa [#allocation5], 0
    %s16 = scalar_lea.sflag [#allocation5], 1
    %17 = vsyncpa %s16, 0
    loop: start=0, step=1, limit=5
    $region2: #{tpu_custom_call.1} parent=1 // loop_pre_header
      _
    $region3: #{tpu_custom_call.1} parent=1 // loop_header
      %s19 = sphi 0, %s23
      %p20 = scmp.ge.s32.totalorder %s19, 5
      %s26 = sphi 0, %s38
      %s27 = sphi 0, %s34
      %s28 = sphi 0, %s26
      %s29 = sphi 0, %s27
      %s30 = sphi 0, %s28
      %s31 = sphi 0, %s29
      %s41 = sphi 0, %s43
      %s44 = sphi 0, %s41
      %s45 = sphi 0, %s44
      %s61 = sphi 0, %s45
      %s65 = sphi 0, %s65
      %s67 = sphi 0, %s65
      %s68 = sphi 0, %s67
      %s82 = sphi 0, %s68
      %s86 = sphi 0, %s86
      %s88 = sphi 0, %s86
      %s89 = sphi 0, %s88
      %s103 = sphi 0, %s89
      %s109 = sphi 0, %s111
      %s112 = sphi 0, %s109
      %s113 = sphi 0, %s112
      %s129 = sphi 0, %s113
      %s135 = sphi 0, %s137
      %s138 = sphi 0, %s135
      %s139 = sphi 0, %s138
      %s155 = sphi 0, %s139
      %s163 = sphi 0, %s165
      %s166 = sphi 0, %s163
      %s167 = sphi 0, %s166
      %s183 = sphi 0, %s167
    $region4: #{tpu_custom_call.1} parent=1 // loop_header_branch
      %22 = sbr.rel (%p20) target = $region8
    $region5: #{tpu_custom_call.1} parent=1 // loop_body
      %s24 = ssub.s32 %s19, 1
      %s25 = ssub.s32 %s19, 2
      %s32 = sadd.s32 1, %s27
      %p33 = scmp.ge.s32.totalorder %s32, 3
      %s34 = scalar_select %p33, 0, %s32
      %s35 = sadd.s32 1, %s26
      %s36 = scalar_select %p33, %s35, %s26
      %p37 = scmp.ge.s32.totalorder %s36, 1
      %s38 = scalar_select %p37, 0, %s36
      %s39 = ssub.s32 %s26, %s38
      %p40 = scmp.eq.s32.totalorder %s39, 0
      %s42 = sadd.s32 %s41, 1
      %s43 = scalar_select %p40, %s41, %s42
      %p46 = pneg %p40
      %p47 = scmp.eq.s32.totalorder %s19, 2
      %p48 = por %p46, %p47
      %p49 = scmp.ne.s32.totalorder %s41, %s44
      %p50 = scmp.eq.s32.totalorder %s19, 0
      %p51 = por %p49, %p50
      %p52 = scmp.ne.s32.totalorder %s41, %s44
      %p53 = scmp.eq.s32.totalorder %s24, 2
      %p54 = por %p52, %p53
      %p55 = scmp.ne.s32.totalorder %s44, %s45
      %p56 = scmp.eq.s32.totalorder %s24, 0
      %p57 = por %p55, %p56
      %p58 = scmp.ne.s32.totalorder %s44, %s45
      %p59 = scmp.eq.s32.totalorder %s25, 2
      %p60 = por %p58, %p59
      %p62 = scmp.ne.s32.totalorder %s45, %s61
      %p63 = scmp.eq.s32.totalorder %s25, 0
      %p64 = por %p62, %p63
      %s66 = sadd.s32 %s65, 1
      %p69 = scmp.eq.s32.totalorder %s19, 2
      %p70 = scmp.ne.s32.totalorder %s65, %s67
      %p71 = scmp.eq.s32.totalorder %s19, 0
      %p72 = por %p70, %p71
      %p73 = scmp.ne.s32.totalorder %s65, %s67
      %p74 = scmp.eq.s32.totalorder %s24, 2
      %p75 = por %p73, %p74
      %p76 = scmp.ne.s32.totalorder %s67, %s68
      %p77 = scmp.eq.s32.totalorder %s24, 0
      %p78 = por %p76, %p77
      %p79 = scmp.ne.s32.totalorder %s67, %s68
      %p80 = scmp.eq.s32.totalorder %s25, 2
      %p81 = por %p79, %p80
      %p83 = scmp.ne.s32.totalorder %s68, %s82
      %p84 = scmp.eq.s32.totalorder %s25, 0
      %p85 = por %p83, %p84
      %s87 = sadd.s32 %s86, 1
      %p90 = scmp.eq.s32.totalorder %s19, 2
      %p91 = scmp.ne.s32.totalorder %s86, %s88
      %p92 = scmp.eq.s32.totalorder %s19, 0
      %p93 = por %p91, %p92
      %p94 = scmp.ne.s32.totalorder %s86, %s88
      %p95 = scmp.eq.s32.totalorder %s24, 2
      %p96 = por %p94, %p95
      %p97 = scmp.ne.s32.totalorder %s88, %s89
      %p98 = scmp.eq.s32.totalorder %s24, 0
      %p99 = por %p97, %p98
      %p100 = scmp.ne.s32.totalorder %s88, %s89
      %p101 = scmp.eq.s32.totalorder %s25, 2
      %p102 = por %p100, %p101
      %p104 = scmp.ne.s32.totalorder %s89, %s103
      %p105 = scmp.eq.s32.totalorder %s25, 0
      %p106 = por %p104, %p105
      %s107 = ssub.s32 %s27, %s34
      %p108 = scmp.eq.s32.totalorder %s107, 0
      %s110 = sadd.s32 %s109, 1
      %s111 = scalar_select %p108, %s109, %s110
      %p114 = pneg %p108
      %p115 = scmp.eq.s32.totalorder %s19, 2
      %p116 = por %p114, %p115
      %p117 = scmp.ne.s32.totalorder %s109, %s112
      %p118 = scmp.eq.s32.totalorder %s19, 0
      %p119 = por %p117, %p118
      %p120 = scmp.ne.s32.totalorder %s109, %s112
      %p121 = scmp.eq.s32.totalorder %s24, 2
      %p122 = por %p120, %p121
      %p123 = scmp.ne.s32.totalorder %s112, %s113
      %p124 = scmp.eq.s32.totalorder %s24, 0
      %p125 = por %p123, %p124
      %p126 = scmp.ne.s32.totalorder %s112, %s113
      %p127 = scmp.eq.s32.totalorder %s25, 2
      %p128 = por %p126, %p127
      %p130 = scmp.ne.s32.totalorder %s113, %s129
      %p131 = scmp.eq.s32.totalorder %s25, 0
      %p132 = por %p130, %p131
      %s133 = ssub.s32 %s27, %s34
      %p134 = scmp.eq.s32.totalorder %s133, 0
      %s136 = sadd.s32 %s135, 1
      %s137 = scalar_select %p134, %s135, %s136
      %p140 = pneg %p134
      %p141 = scmp.eq.s32.totalorder %s19, 2
      %p142 = por %p140, %p141
      %p143 = scmp.ne.s32.totalorder %s135, %s138
      %p144 = scmp.eq.s32.totalorder %s19, 0
      %p145 = por %p143, %p144
      %p146 = scmp.ne.s32.totalorder %s135, %s138
      %p147 = scmp.eq.s32.totalorder %s24, 2
      %p148 = por %p146, %p147
      %p149 = scmp.ne.s32.totalorder %s138, %s139
      %p150 = scmp.eq.s32.totalorder %s24, 0
      %p151 = por %p149, %p150
      %p152 = scmp.ne.s32.totalorder %s138, %s139
      %p153 = scmp.eq.s32.totalorder %s25, 2
      %p154 = por %p152, %p153
      %p156 = scmp.ne.s32.totalorder %s139, %s155
      %p157 = scmp.eq.s32.totalorder %s25, 0
      %p158 = por %p156, %p157
      %s159 = ssub.s32 %s26, %s38
      %s160 = ssub.s32 %s27, %s34
      %s161 = sor.u32 %s159, %s160
      %p162 = scmp.eq.s32.totalorder %s161, 0
      %s164 = sadd.s32 %s163, 1
      %s165 = scalar_select %p162, %s163, %s164
      %p168 = pneg %p162
      %p169 = scmp.eq.s32.totalorder %s19, 2
      %p170 = por %p168, %p169
      %p171 = scmp.ne.s32.totalorder %s163, %s166
      %p172 = scmp.eq.s32.totalorder %s19, 0
      %p173 = por %p171, %p172
      %p174 = scmp.ne.s32.totalorder %s163, %s166
      %p175 = scmp.eq.s32.totalorder %s24, 2
      %p176 = por %p174, %p175
      %p177 = scmp.ne.s32.totalorder %s166, %s167
      %p178 = scmp.eq.s32.totalorder %s24, 0
      %p179 = por %p177, %p178
      %p180 = scmp.ne.s32.totalorder %s166, %s167
      %p181 = scmp.eq.s32.totalorder %s25, 2
      %p182 = por %p180, %p181
      %p184 = scmp.ne.s32.totalorder %s167, %s183
      %p185 = scmp.eq.s32.totalorder %s25, 0
      %p186 = por %p184, %p185
      %p187 = scmp.le.s32.totalorder 1, %s19
      %p188 = scmp.lt.s32.totalorder %s19, 4
      %p189 = pnand %p187, %p188
      %p190 = pneg %p189
      // Predicated region
      $region9: #{tpu_custom_call.1} parent=5 // pred_check
        _
      $region10: #{tpu_custom_call.1} parent=5 // pred_check_branch
        %192 = sbr.rel (%p189) target = $region12
      $region11: #{tpu_custom_call.1} parent=5 // pred_region
        %s193 = ssub.s32 %s19, 1
        // Predicated region
        $region13: #{tpu_custom_call.1} parent=11 // pred_check
          %p194 = pneg %p57
        $region14: #{tpu_custom_call.1} parent=11 // pred_check_branch
          %196 = sbr.rel (%p194) target = $region16
        $region15: #{tpu_custom_call.1} parent=11 // pred_region
          %198 = vsyncadd [#allocation4], 0
          %s199 = smul.addr %s28, 4
          %s200 = scalar_lea.hbm %s0, %s199
          %s202 = sshll.u32 %s200, 4
          %s203 = int_to_ptr.hbm [resolvable:$true] %s202
          %s204 = sshll.u32 [#allocation3], 4
          %s205 = int_to_ptr.vmem [resolvable:$true] %s204
          %207 = dma.hbm_to_vmem [thread:$0]  %s203, 64, %s205, [#allocation4]
        $region16: #{tpu_custom_call.1} parent=11 // pred_fallthru
          _
        // Predicated region
        $region17: #{tpu_custom_call.1} parent=11 // pred_check
          %p208 = pneg %p78
        $region18: #{tpu_custom_call.1} parent=11 // pred_check_branch
          %210 = sbr.rel (%p208) target = $region20
        $region19: #{tpu_custom_call.1} parent=11 // pred_region
          %212 = vsyncadd [#allocation7], 0
          %s213 = sshll.u32 %s1, 4
          %s214 = int_to_ptr.hbm [resolvable:$true] %s213
          %s215 = sshll.u32 [#allocation6], 4
          %s216 = int_to_ptr.vmem [resolvable:$true] %s215
          %221 = dma.hbm_to_vmem [thread:$0]  %s214, 1024, %s216, [#allocation7], 64, 64, 4
        $region20: #{tpu_custom_call.1} parent=11 // pred_fallthru
          _
        // Predicated region
        $region21: #{tpu_custom_call.1} parent=11 // pred_check
          %p222 = pneg %p99
        $region22: #{tpu_custom_call.1} parent=11 // pred_check_branch
          %224 = sbr.rel (%p222) target = $region24
        $region23: #{tpu_custom_call.1} parent=11 // pred_region
          %226 = vsyncadd [#allocation7], 0
          %s228 = sshll.u32 %s2, 4
          %s229 = int_to_ptr.hbm [resolvable:$true] %s228
          %s230 = sshll.u32 [#allocation8], 4
          %s231 = int_to_ptr.vmem [resolvable:$true] %s230
          %233 = dma.hbm_to_vmem [thread:$0]  %s229, 16, %s231, [#allocation7]
        $region24: #{tpu_custom_call.1} parent=11 // pred_fallthru
          _
      $region12: #{tpu_custom_call.1} parent=5 // pred_fallthru
        _
      %p234 = scmp.lt.s32.totalorder %s19, 3
      // Predicated region
      $region25: #{tpu_custom_call.1} parent=5 // pred_check
        %p235 = pneg %p234
      $region26: #{tpu_custom_call.1} parent=5 // pred_check_branch
        %237 = sbr.rel (%p235) target = $region28
      $region27: #{tpu_custom_call.1} parent=5 // pred_region
        // Predicated region
        $region29: #{tpu_custom_call.1} parent=27 // pred_check
          %p238 = pneg %p119
        $region30: #{tpu_custom_call.1} parent=27 // pred_check_branch
          %240 = sbr.rel (%p238) target = $region32
        $region31: #{tpu_custom_call.1} parent=27 // pred_region
          %s241 = sand.u32 %s109, 1
          %s242 = scalar_lea.sflag [#allocation10], %s241
          %s243 = sand.u32 %s109, 1
          %s244 = smul.addr %s243, 64
          %s245 = scalar_lea.vmem [#allocation9], %s244
          %247 = vsyncadd %s242, 0
          %s248 = smul.addr %s27, 4
          %s249 = scalar_lea.hbm %s3, %s248
          %s250 = sshll.u32 %s249, 4
          %s251 = int_to_ptr.hbm [resolvable:$true] %s250
          %s252 = sshll.u32 %s245, 4
          %s253 = int_to_ptr.vmem [resolvable:$true] %s252
          %258 = dma.hbm_to_vmem [thread:$0]  %s251, 1024, %s253, %s242, 192, 64, 4
        $region32: #{tpu_custom_call.1} parent=27 // pred_fallthru
          _
        // Predicated region
        $region33: #{tpu_custom_call.1} parent=27 // pred_check
          %p259 = pneg %p145
        $region34: #{tpu_custom_call.1} parent=27 // pred_check_branch
          %261 = sbr.rel (%p259) target = $region36
        $region35: #{tpu_custom_call.1} parent=27 // pred_region
          %p262 = scmp.lt.s32.totalorder %s27, 2
          %s263 = scalar_select %p262, %s27, 2
          %s264 = scalar_lea.vmem %s4, %s263
        $region36: #{tpu_custom_call.1} parent=27 // pred_fallthru
          _
      $region28: #{tpu_custom_call.1} parent=5 // pred_fallthru
        _
      %p265 = scmp.le.s32.totalorder 1, %s19
      %p266 = scmp.lt.s32.totalorder %s19, 4
      %p267 = pnand %p265, %p266
      %p268 = pneg %p267
      // Predicated region
      $region37: #{tpu_custom_call.1} parent=5 // pred_check
        _
      $region38: #{tpu_custom_call.1} parent=5 // pred_check_branch
        %270 = sbr.rel (%p267) target = $region40
      $region39: #{tpu_custom_call.1} parent=5 // pred_region
        %s271 = ssub.s32 %s19, 1
        // Predicated region
        $region41: #{tpu_custom_call.1} parent=39 // pred_check
          %p272 = pneg %p57
        $region42: #{tpu_custom_call.1} parent=39 // pred_check_branch
          %274 = sbr.rel (%p272) target = $region44
        $region43: #{tpu_custom_call.1} parent=39 // pred_region
          %276 = dma.done [#allocation4], 64
        $region44: #{tpu_custom_call.1} parent=39 // pred_fallthru
          _
        // Predicated region
        $region45: #{tpu_custom_call.1} parent=39 // pred_check
          %p277 = pneg %p78
        $region46: #{tpu_custom_call.1} parent=39 // pred_check_branch
          %279 = sbr.rel (%p277) target = $region48
        $region47: #{tpu_custom_call.1} parent=39 // pred_region
          %281 = dma.done [#allocation7], 1024
        $region48: #{tpu_custom_call.1} parent=39 // pred_fallthru
          _
        // Predicated region
        $region49: #{tpu_custom_call.1} parent=39 // pred_check
          %p282 = pneg %p99
        $region50: #{tpu_custom_call.1} parent=39 // pred_check_branch
          %284 = sbr.rel (%p282) target = $region52
        $region51: #{tpu_custom_call.1} parent=39 // pred_region
          %286 = dma.done [#allocation7], 16
        $region52: #{tpu_custom_call.1} parent=39 // pred_fallthru
          _
        %s287 = sand.u32 %s112, 1
        %s288 = scalar_lea.sflag [#allocation10], %s287
        %s289 = sand.u32 %s112, 1
        %s290 = smul.addr %s289, 64
        %s291 = scalar_lea.vmem [#allocation9], %s290
        // Predicated region
        $region53: #{tpu_custom_call.1} parent=39 // pred_check
          %p292 = pneg %p125
        $region54: #{tpu_custom_call.1} parent=39 // pred_check_branch
          %294 = sbr.rel (%p292) target = $region56
        $region55: #{tpu_custom_call.1} parent=39 // pred_region
          %296 = dma.done %s288, 1024
        $region56: #{tpu_custom_call.1} parent=39 // pred_fallthru
          _
        %p297 = pneg %p57
        %p298 = pneg %p54
        %p299 = pneg %p78
        %p300 = pneg %p75
        %p301 = pneg %p99
        %p302 = pneg %p96
        %s303 = sand.u32 %s112, 1
        %s304 = scalar_lea.sflag [#allocation10], %s303
        %s305 = sand.u32 %s112, 1
        %s306 = smul.addr %s305, 64
        %s307 = scalar_lea.vmem [#allocation9], %s306
        %p308 = pneg %p125
        %p309 = pneg %p122
        %p310 = scmp.lt.s32.totalorder %s29, 2
        %s311 = scalar_select %p310, %s29, 2
        %s312 = scalar_lea.vmem %s4, %s311
        %p313 = pneg %p151
        %p314 = pneg %p148
        %p315 = pneg %p179
        %p316 = pneg %p176
        %s317 = sand.u32 %s166, 1
        %s318 = scalar_lea.sflag [#allocation5], %s317
        %s319 = sand.u32 %s166, 1
        %s320 = smul.addr %s319, 8
        %s321 = scalar_lea.vmem [#allocation11], %s320
        %p322 = scmp.lt.s32.totalorder %s29, 2
        %s323 = scalar_select %p322, %s29, 2
        %s324 = scalar_lea.vmem %s4, %s323
        %p325 = scmp.eq.s32.totalorder %s29, 0
        // Predicated region
        $region57: #{tpu_custom_call.1} parent=39 // pred_check
          %p326 = pneg %p325
        $region58: #{tpu_custom_call.1} parent=39 // pred_check_branch
          %328 = sbr.rel (%p326) target = $region60
        $region59: #{tpu_custom_call.1} parent=39 // pred_region
          %v329 = vld [vmem:[#allocation3] sm:$0xf]
          %v330 = vld [vmem:[#allocation6] sm:$0xf]
          %v331 = vld [vmem:[#allocation6 + $0x4] sm:$0xf]
          %v332 = vld [vmem:[#allocation6 + $0x8] sm:$0xf]
          %v333 = vld [vmem:[#allocation6 + $0xc] sm:$0xf]
          %v334 = vld [vmem:[#allocation6 + $0x10] sm:$0xf]
          %v335 = vld [vmem:[#allocation6 + $0x14] sm:$0xf]
          %v336 = vld [vmem:[#allocation6 + $0x18] sm:$0xf]
          %v337 = vld [vmem:[#allocation6 + $0x1c] sm:$0xf]
          %v338 = vld [vmem:[#allocation6 + $0x20] sm:$0xf]
          %v339 = vld [vmem:[#allocation6 + $0x24] sm:$0xf]
          %v340 = vld [vmem:[#allocation6 + $0x28] sm:$0xf]
          %v341 = vld [vmem:[#allocation6 + $0x2c] sm:$0xf]
          %v342 = vld [vmem:[#allocation6 + $0x30] sm:$0xf]
          %v343 = vld [vmem:[#allocation6 + $0x34] sm:$0xf]
          %v344 = vld [vmem:[#allocation6 + $0x38] sm:$0xf]
          %v345 = vld [vmem:[#allocation6 + $0x3c] sm:$0xf]
          %v346 = vld [vmem:[#allocation8] sm:$0x1]
          %v348 = vperm.slane %v346, 0
          %v366 = vunpack.c.l.b16 %v330
          %v367 = vunpack.c.l.b16 %v331
          %v368 = vunpack.c.l.b16 %v332
          %v369 = vunpack.c.l.b16 %v333
          %v370 = vunpack.c.l.b16 %v334
          %v371 = vunpack.c.l.b16 %v335
          %v372 = vunpack.c.l.b16 %v336
          %v373 = vunpack.c.l.b16 %v337
          %v374 = vunpack.c.l.b16 %v338
          %v375 = vunpack.c.l.b16 %v339
          %v376 = vunpack.c.l.b16 %v340
          %v377 = vunpack.c.l.b16 %v341
          %v378 = vunpack.c.l.b16 %v342
          %v379 = vunpack.c.l.b16 %v343
          %v380 = vunpack.c.l.b16 %v344
          %v381 = vunpack.c.l.b16 %v345
          %v382 = vpack.c.b16 %v367, %v366
          %v383 = vpack.c.b16 %v369, %v368
          %v384 = vpack.c.b16 %v371, %v370
          %v385 = vpack.c.b16 %v373, %v372
          %v386 = vpack.c.b16 %v375, %v374
          %v387 = vpack.c.b16 %v377, %v376
          %v388 = vpack.c.b16 %v379, %v378
          %v389 = vpack.c.b16 %v381, %v380
          %398 = vmatpush.bf16.msra.mxu0 %v389
          %399 = vmatpush.bf16.msra.mxu0 %v388
          %400 = vmatpush.bf16.msra.mxu0 %v387
          %401 = vmatpush.bf16.msra.mxu0 %v386
          %402 = vmatpush.bf16.msra.mxu0 %v385
          %403 = vmatpush.bf16.msra.mxu0 %v384
          %404 = vmatpush.bf16.msra.mxu0 %v383
          %405 = vmatpush.bf16.msra.mxu0 %v382
          %406 = vmatmul.bf16.gmra.mxu0 %v329
          %v407 = vpop.f32.mrf.mxu0
          %v408 = vadd.f32 %v348, %v407
          %v409 = vpop.f32.mrf.mxu0
          %410 = vdwg.mxu0
          %v411 = vmax.f32 %v408, 0.0
          %v412 = vpack.c.bf16 %v411, %v411
          %413 = vst [vmem:[#allocation2] sm:$0xf] %v412
        $region60: #{tpu_custom_call.1} parent=39 // pred_fallthru
          _
        %v414 = vld [vmem:[#allocation2] sm:$0xf]
        %v415 = vld [vmem:[%s291] sm:$0xf]
        %v416 = vld [vmem:[%s291 + $0x4] sm:$0xf]
        %v417 = vld [vmem:[%s291 + $0x8] sm:$0xf]
        %v418 = vld [vmem:[%s291 + $0xc] sm:$0xf]
        %v419 = vld [vmem:[%s291 + $0x10] sm:$0xf]
        %v420 = vld [vmem:[%s291 + $0x14] sm:$0xf]
        %v421 = vld [vmem:[%s291 + $0x18] sm:$0xf]
        %v422 = vld [vmem:[%s291 + $0x1c] sm:$0xf]
        %v423 = vld [vmem:[%s291 + $0x20] sm:$0xf]
        %v424 = vld [vmem:[%s291 + $0x24] sm:$0xf]
        %v425 = vld [vmem:[%s291 + $0x28] sm:$0xf]
        %v426 = vld [vmem:[%s291 + $0x2c] sm:$0xf]
        %v427 = vld [vmem:[%s291 + $0x30] sm:$0xf]
        %v428 = vld [vmem:[%s291 + $0x34] sm:$0xf]
        %v429 = vld [vmem:[%s291 + $0x38] sm:$0xf]
        %v430 = vld [vmem:[%s291 + $0x3c] sm:$0xf]
        %v431 = vld [vmem:[%s324] sm:$0x1]
        %v433 = vperm.slane %v431, 0
        %v451 = vunpack.c.l.b16 %v415
        %v452 = vunpack.c.l.b16 %v416
        %v453 = vunpack.c.l.b16 %v417
        %v454 = vunpack.c.l.b16 %v418
        %v455 = vunpack.c.l.b16 %v419
        %v456 = vunpack.c.l.b16 %v420
        %v457 = vunpack.c.l.b16 %v421
        %v458 = vunpack.c.l.b16 %v422
        %v459 = vunpack.c.l.b16 %v423
        %v460 = vunpack.c.l.b16 %v424
        %v461 = vunpack.c.l.b16 %v425
        %v462 = vunpack.c.l.b16 %v426
        %v463 = vunpack.c.l.b16 %v427
        %v464 = vunpack.c.l.b16 %v428
        %v465 = vunpack.c.l.b16 %v429
        %v466 = vunpack.c.l.b16 %v430
        %v467 = vpack.c.b16 %v452, %v451
        %v468 = vpack.c.b16 %v454, %v453
        %v469 = vpack.c.b16 %v456, %v455
        %v470 = vpack.c.b16 %v458, %v457
        %v471 = vpack.c.b16 %v460, %v459
        %v472 = vpack.c.b16 %v462, %v461
        %v473 = vpack.c.b16 %v464, %v463
        %v474 = vpack.c.b16 %v466, %v465
        %483 = vmatpush.bf16.msra.mxu0 %v474
        %484 = vmatpush.bf16.msra.mxu0 %v473
        %485 = vmatpush.bf16.msra.mxu0 %v472
        %486 = vmatpush.bf16.msra.mxu0 %v471
        %487 = vmatpush.bf16.msra.mxu0 %v470
        %488 = vmatpush.bf16.msra.mxu0 %v469
        %489 = vmatpush.bf16.msra.mxu0 %v468
        %490 = vmatpush.bf16.msra.mxu0 %v467
        %491 = vmatmul.bf16.gmra.mxu0 %v414
        %v492 = vpop.f32.mrf.mxu0
        %v493 = vadd.f32 %v433, %v492
        %v494 = vpop.f32.mrf.mxu0
        %495 = vdwg.mxu0
        %496 = vst [vmem:[%s321] sm:$0xff] %v493
        %s497 = sand.u32 %s166, 1
        %s498 = scalar_lea.sflag [#allocation5], %s497
        %s499 = sand.u32 %s166, 1
        %s500 = smul.addr %s499, 8
        %s501 = scalar_lea.vmem [#allocation11], %s500
        // Predicated region
        $region61: #{tpu_custom_call.1} parent=39 // pred_check
          %p502 = pneg %p176
        $region62: #{tpu_custom_call.1} parent=39 // pred_check_branch
          %504 = sbr.rel (%p502) target = $region64
        $region63: #{tpu_custom_call.1} parent=39 // pred_region
          %506 = vsyncadd %s498, 0
          %s507 = smul.addr %s28, 3
          %s508 = sadd.s32 %s29, %s507
          %s509 = smul.addr %s508, 8
          %s510 = scalar_lea.hbm %s5, %s509
          %s512 = sshll.u32 %s501, 4
          %s513 = int_to_ptr.vmem [resolvable:$true] %s512
          %s514 = sshll.u32 %s510, 4
          %s515 = int_to_ptr.hbm [resolvable:$true] %s514
          %517 = dma.vmem_to_hbm [thread:$0]  %s513, 128, %s515, %s498
        $region64: #{tpu_custom_call.1} parent=39 // pred_fallthru
          _
      $region40: #{tpu_custom_call.1} parent=5 // pred_fallthru
        _
      %p518 = scmp.le.s32.totalorder 2, %s19
      // Predicated region
      $region65: #{tpu_custom_call.1} parent=5 // pred_check
        %p519 = pneg %p518
      $region66: #{tpu_custom_call.1} parent=5 // pred_check_branch
        %521 = sbr.rel (%p519) target = $region68
      $region67: #{tpu_custom_call.1} parent=5 // pred_region
        %s522 = ssub.s32 %s19, 2
        // Predicated region
        $region69: #{tpu_custom_call.1} parent=67 // pred_check
          %p523 = pneg %p182
        $region70: #{tpu_custom_call.1} parent=67 // pred_check_branch
          %525 = sbr.rel (%p523) target = $region72
        $region71: #{tpu_custom_call.1} parent=67 // pred_region
          %s526 = sand.u32 %s167, 1
          %s527 = scalar_lea.sflag [#allocation5], %s526
          %s528 = sand.u32 %s167, 1
          %s529 = smul.addr %s528, 8
          %s530 = scalar_lea.vmem [#allocation11], %s529
          %532 = dma.done %s527, 128
        $region72: #{tpu_custom_call.1} parent=67 // pred_fallthru
          _
      $region68: #{tpu_custom_call.1} parent=5 // pred_fallthru
        _
    $region6: #{tpu_custom_call.1} parent=1 // loop_footer
      %s23 = sadd.s32 1, %s19
    $region7: #{tpu_custom_call.1} parent=1 // loop_footer_branch
      %18 = sbr.rel target = $region3
    $region8: #{tpu_custom_call.1} parent=1 // loop_exit
      _
    %533 = vsyncpa [#allocation4], 1
    %s534 = scalar_lea.sflag [#allocation4], 1
    %535 = vsyncpa %s534, 1
    %536 = vsyncpa [#allocation7], 1
    %537 = vsyncpa [#allocation10], 1
    %s538 = scalar_lea.sflag [#allocation10], 1
    %539 = vsyncpa %s538, 1
    %540 = vsyncpa [#allocation5], 1
    %s541 = scalar_lea.sflag [#allocation5], 1
    %542 = vsyncpa %s541, 1

</llo_original>
